<compile_context>
chip_gen: v6e
topology: v6e:2x2x1
jax: 0.10.0
libtpu: 0.0.40
codegen_flags: <defaults>
</compile_context>

<pallas_src>
import numpy as np
import jax
import jax.numpy as jnp
from jax.experimental import pallas as pl
from jax.experimental.pallas import tpu as pltpu

LANE = 128   # output columns padded to one full lane group -> unmasked stores
PAD = 1      # all convs are 3x3, padding=1


def _round_up(x, m):
    return (x + m - 1) // m * m


# ------------------------------ Pallas kernels ------------------------------

def _silu(x):
    # x * sigmoid(x); exp and approximate reciprocal both run on the EUP.
    return x * pl.reciprocal(1.0 + jnp.exp(-x), approx=True)


def _stem_kernel(a_ref, w_ref, scale_ref, shift_ref, o_conv, o_bn, o_act):
    """Fused conv_stem (bias=False) -> bn1 -> act1; single MXU dot."""
    acc = jnp.dot(a_ref[...], w_ref[...], preferred_element_type=jnp.float32)
    o_conv[...] = acc                                   # conv_stem feature
    bn = acc * scale_ref[...] + shift_ref[...]          # bn1 feature
    o_bn[...] = bn
    o_act[...] = _silu(bn)                              # act1 feature


def _block_kernel(a_ref, w_ref, bias_ref, o_act):
    """Fused conv (+bias) -> SiLU; single MXU dot."""
    acc = jnp.dot(a_ref[...], w_ref[...], preferred_element_type=jnp.float32)
    o_act[...] = _silu(acc + bias_ref[...])


# ------------------------- host-side weight packing --------------------------

def _pack_stage(w_hwio, stride, h, w):
    """Build (numpy, host-side, once per trace) the concatenated banded weight
    (K_total, npad) for one 3x3 conv stage, plus the group schedule used to
    build the matching tap-stacked LHS.  Output columns are packed row-major
    as (wo, cout) and padded to npad = round_up(wo*cout, 128)."""
    w_hwio = np.asarray(w_hwio, dtype=np.float32)
    kh, kw, cin, cout = w_hwio.shape
    ho = (h + 2 * PAD - kh) // stride + 1
    wo = (w + 2 * PAD - kw) // stride + 1
    wp = w + 2 * PAD
    npad = _round_up(wo * cout, LANE)

    groups, w_blocks = [], []
    for ky in range(kh):
        for cp in range(stride):
            kxs = [kx for kx in range(kw) if kx % stride == cp]
            if not kxs:
                continue
            wph = (wp - cp + stride - 1) // stride     # per-phase width
            wb = np.zeros((wph * cin, npad), np.float32)
            for kx in kxs:
                coff = kx // stride
                tap = w_hwio[ky, kx]                   # (cin, cout)
                for x in range(wo):
                    wb[(x + coff) * cin:(x + coff + 1) * cin,
                       x * cout:(x + 1) * cout] = tap
            groups.append((ky, cp, wph))
            w_blocks.append(wb)

    wmat = np.concatenate(w_blocks, axis=0)            # (K_total, npad)
    meta = dict(stride=stride, ho=ho, wo=wo, cin=cin, cout=cout,
                npad=npad, groups=groups)
    return wmat, meta


def _pack_row(vec, wo, cout, npad):
    """Per-channel vector -> (1, npad) row matching the packed output layout
    (column index = x*cout + c)."""
    row = np.zeros((1, npad), np.float32)
    row[0, :wo * cout] = np.tile(np.asarray(vec, np.float32), wo)
    return row


# ------------------------------ wrapper glue ---------------------------------

def _build_lhs(x_nhwc, meta):
    """Tap-stacked LHS (N*Ho, K_total) in bf16.  Each group (ky, column-phase)
    contributes a contiguous K block = flattened phase view of the padded
    input; zero padding contributions are exact."""
    n, _, _, cin = x_nhwc.shape
    stride, ho = meta["stride"], meta["ho"]
    xp = jnp.pad(x_nhwc, ((0, 0), (PAD, PAD), (PAD, PAD), (0, 0)))
    blocks = []
    for (ky, cp, wph) in meta["groups"]:
        blk = xp[:, ky: ky + (ho - 1) * stride + 1: stride, cp::stride, :]
        blocks.append(blk.reshape(n * ho, wph * cin))
    return jnp.concatenate(blocks, axis=1).astype(jnp.bfloat16)


def _run_stage(lhs, wmat_np, rows_np, mode, n, meta):
    """One pallas_call for an entire stage (single dot + fused epilogues)."""
    m, k = lhs.shape
    npad, ho, wo, cout = meta["npad"], meta["ho"], meta["wo"], meta["cout"]

    wmat = jnp.asarray(wmat_np, dtype=jnp.bfloat16)
    rows = [jnp.asarray(r, dtype=jnp.float32) for r in rows_np]

    if mode == "stem":
        kernel, n_out = _stem_kernel, 3
    else:
        kernel, n_out = _block_kernel, 1

    in_specs = ([pl.BlockSpec((m, k), lambda i: (0, 0)),
                 pl.BlockSpec((k, npad), lambda i: (0, 0))]
                + [pl.BlockSpec((1, npad), lambda i: (0, 0))] * len(rows))
    out_specs = [pl.BlockSpec((m, npad), lambda i: (0, 0))] * n_out
    out_shape = [jax.ShapeDtypeStruct((m, npad), jnp.float32)] * n_out

    outs = pl.pallas_call(
        kernel,
        grid=(1,),
        in_specs=in_specs,
        out_specs=out_specs,
        out_shape=out_shape,
        compiler_params=pltpu.CompilerParams(
            dimension_semantics=("arbitrary",)),
    )(lhs, wmat, *rows)

    # packed (N*Ho, npad) -> NHWC (N, Ho, Wo, Cout)
    return [o[:, :wo * cout].reshape(n, ho, wo, cout) for o in outs]


def _to_nchw(x_nhwc):
    return jnp.transpose(x_nhwc, (0, 3, 1, 2))


# ----------------------------- Encoder forward -------------------------------

def encoder_forward(x_nchw, params):
    """Mirrors Encoder.forward: iterate backend modules, collect features.
    The compute chain stays NHWC; NCHW transposes only materialize the
    PyTorch-convention feature copies."""
    n, _, h, w = x_nchw.shape
    features = [x_nchw]
    x = jnp.transpose(x_nchw, (0, 2, 3, 1))

    # eval-mode BatchNorm folded to a single affine (host-side constants).
    eps = 1e-5
    scale = params["bn_gamma"] / np.sqrt(params["bn_var"] + eps)
    shift = params["bn_beta"] - params["bn_mean"] * scale

    # 'conv_stem' + 'bn1' + 'act1': one fused pallas_call, three outputs.
    wmat, meta = _pack_stage(params["stem_w"], stride=2, h=h, w=w)
    rows = [_pack_row(scale, meta["wo"], meta["cout"], meta["npad"]),
            _pack_row(shift, meta["wo"], meta["cout"], meta["npad"])]
    conv_o, bn_o, act_o = _run_stage(_build_lhs(x, meta), wmat, rows,
                                     "stem", n, meta)
    features += [_to_nchw(conv_o), _to_nchw(bn_o), _to_nchw(act_o)]

    # 'blocks': conv(+bias)+SiLU fused; one pallas_call and one feature each.
    x = act_o
    for blk in params["blocks"]:
        bh, bw = x.shape[1], x.shape[2]
        wmat, meta = _pack_stage(blk["w"], stride=blk["stride"], h=bh, w=bw)
        rows = [_pack_row(blk["b"], meta["wo"], meta["cout"], meta["npad"])]
        (x,) = _run_stage(_build_lhs(x, meta), wmat, rows, "block", n, meta)
        features.append(_to_nchw(x))
    return features


# ------------------------- deterministic parameters --------------------------

def make_params():
    key = jax.random.PRNGKey(0)
    ks = jax.random.split(key, 8)
    f32 = jnp.float32
    npf = lambda a: np.asarray(a, dtype=np.float32)   # host-side constants

    stem_w = npf(0.2 * jax.random.normal(ks[0], (3, 3, 4, 8), dtype=f32))
    bn_gamma = npf(1.0 + 0.1 * jax.random.normal(ks[1], (8,), dtype=f32))
    bn_beta = npf(0.1 * jax.random.normal(ks[2], (8,), dtype=f32))
    bn_mean = npf(0.05 * jax.random.normal(ks[3], (8,), dtype=f32))
    bn_var = npf(jnp.abs(1.0 + 0.1 * jax.random.normal(ks[4], (8,), dtype=f32)))

    blocks = [
        dict(w=npf(0.15 * jax.random.normal(ks[5], (3, 3, 8, 16), dtype=f32)),
             b=npf(0.05 * jax.random.normal(ks[6], (16,), dtype=f32)),
             stride=2),
        dict(w=npf(0.15 * jax.random.normal(ks[7], (3, 3, 16, 16), dtype=f32)),
             b=np.zeros((16,), dtype=np.float32),
             stride=1),
    ]
    return dict(stem_w=stem_w, bn_gamma=bn_gamma, bn_beta=bn_beta,
                bn_mean=bn_mean, bn_var=bn_var, blocks=blocks)


# ------------------------- pure-JAX reference (XLA) ---------------------------

def reference_features(x_nchw, params):
    def conv(t, w, stride):
        return jax.lax.conv_general_dilated(
            t, jnp.asarray(w), window_strides=(stride, stride),
            padding=((PAD, PAD), (PAD, PAD)),
            dimension_numbers=("NHWC", "HWIO", "NHWC"))

    x = jnp.transpose(x_nchw, (0, 2, 3, 1))
    eps = 1e-5
    scale = params["bn_gamma"] / jnp.sqrt(params["bn_var"] + eps)
    shift = params["bn_beta"] - params["bn_mean"] * scale

    stem = conv(x, params["stem_w"], 2)
    bn = stem * scale + shift
    act = bn * jax.nn.sigmoid(bn)
    feats = [stem, bn, act]
    h = act
    for blk in params["blocks"]:
        h = conv(h, blk["w"], blk["stride"]) + blk["b"]
        h = h * jax.nn.sigmoid(h)
        feats.append(h)
    return [x_nchw] + [jnp.transpose(f, (0, 3, 1, 2)) for f in feats]


# ----------------------------------- main -------------------------------------

if __name__ == "__main__":
    params = make_params()
    key = jax.random.PRNGKey(0)
    x = jax.random.normal(key, (2, 4, 16, 16), dtype=jnp.float32)   # NCHW

    fwd = jax.jit(lambda inp: encoder_forward(inp, params))
    feats = fwd(x)
    feats = [jax.block_until_ready(f) for f in feats]

    expected_shapes = [
        (2, 4, 16, 16),   # input
        (2, 8, 8, 8),     # conv_stem
        (2, 8, 8, 8),     # bn1
        (2, 8, 8, 8),     # act1
        (2, 16, 4, 4),    # blocks.0
        (2, 16, 4, 4),    # blocks.1
    ]
    assert len(feats) == len(expected_shapes)

    ref = reference_features(x, params)
    for f, r, s in zip(feats, ref, expected_shapes):
        assert f.shape == s, (f.shape, s)
        assert bool(jnp.all(jnp.isfinite(f)))
        # tolerance covers bf16 MXU operands + approx-reciprocal SiLU,
        # compounded over three conv stages (values are O(1)).
        assert bool(jnp.allclose(f, r, rtol=4e-2, atol=4e-2)), \
            float(jnp.max(jnp.abs(f - r)))

    print("KERNEL_OK")
</pallas_src>

<mosaic_0001>
module attributes {stable_mosaic.version = 11 : i64} {
  func.func @_stem_kernel(%arg0: i32, %arg1: memref<16x216xbf16, #tpu.memory_space<vmem>>, %arg2: memref<216x128xbf16, #tpu.memory_space<vmem>>, %arg3: memref<1x128xf32, #tpu.memory_space<vmem>>, %arg4: memref<1x128xf32, #tpu.memory_space<vmem>>, %arg5: memref<16x128xf32, #tpu.memory_space<vmem>>, %arg6: memref<16x128xf32, #tpu.memory_space<vmem>>, %arg7: memref<16x128xf32, #tpu.memory_space<vmem>>) attributes {dimension_semantics = [#tpu.dimension_semantics<arbitrary>], iteration_bounds = array<i64: 1>, scalar_prefetch = 0 : i64, scratch_operands = 0 : i64, tpu.core_type = #tpu.core_type<tc>, window_params = [{pipeline_mode = #tpu.pipeline_mode<synchronous>, transform_indices = @transform_0, window_bounds = array<i64: 16, 216>}, {pipeline_mode = #tpu.pipeline_mode<synchronous>, transform_indices = @transform_1, window_bounds = array<i64: 216, 128>}, {pipeline_mode = #tpu.pipeline_mode<synchronous>, transform_indices = @transform_2, window_bounds = array<i64: 1, 128>}, {pipeline_mode = #tpu.pipeline_mode<synchronous>, transform_indices = @transform_3, window_bounds = array<i64: 1, 128>}, {pipeline_mode = #tpu.pipeline_mode<synchronous>, transform_indices = @transform_4, window_bounds = array<i64: 16, 128>}, {pipeline_mode = #tpu.pipeline_mode<synchronous>, transform_indices = @transform_5, window_bounds = array<i64: 16, 128>}, {pipeline_mode = #tpu.pipeline_mode<synchronous>, transform_indices = @transform_6, window_bounds = array<i64: 16, 128>}]} {
    %c0 = arith.constant 0 : index
    %c0_0 = arith.constant 0 : index
    %0 = vector.load %arg1[%c0, %c0_0] : memref<16x216xbf16, #tpu.memory_space<vmem>>, vector<16x216xbf16>
    %c0_1 = arith.constant 0 : index
    %c0_2 = arith.constant 0 : index
    %1 = vector.load %arg2[%c0_1, %c0_2] : memref<216x128xbf16, #tpu.memory_space<vmem>>, vector<216x128xbf16>
    %cst = arith.constant dense<0.000000e+00> : vector<16x128xf32>
    %2 = tpu.matmul %0, %1, %cst {dimension_numbers = #tpu.dot_dimension_numbers<[1], [0], [0], [1], [0, 0, 1, 1], [], []>} : vector<16x216xbf16>, vector<216x128xbf16>, vector<16x128xf32> -> vector<16x128xf32>
    %c0_3 = arith.constant 0 : index
    %c0_4 = arith.constant 0 : index
    %3 = vector.load %arg5[%c0_3, %c0_4] : memref<16x128xf32, #tpu.memory_space<vmem>>, vector<16x128xf32>
    tpu.vector_store %arg5[%c0_3, %c0_4], %2 {strides = array<i32>} : memref<16x128xf32, #tpu.memory_space<vmem>>, vector<16x128xf32>,
    %c0_5 = arith.constant 0 : index
    %c0_6 = arith.constant 0 : index
    %4 = vector.load %arg3[%c0_5, %c0_6] : memref<1x128xf32, #tpu.memory_space<vmem>>, vector<1x128xf32>
    %5 = vector.broadcast %4 : vector<1x128xf32> to vector<16x128xf32>
    %6 = arith.mulf %2, %5 : vector<16x128xf32>
    %c0_7 = arith.constant 0 : index
    %c0_8 = arith.constant 0 : index
    %7 = vector.load %arg4[%c0_7, %c0_8] : memref<1x128xf32, #tpu.memory_space<vmem>>, vector<1x128xf32>
    %8 = vector.broadcast %7 : vector<1x128xf32> to vector<16x128xf32>
    %9 = arith.addf %6, %8 : vector<16x128xf32>
    %c0_9 = arith.constant 0 : index
    %c0_10 = arith.constant 0 : index
    %10 = vector.load %arg6[%c0_9, %c0_10] : memref<16x128xf32, #tpu.memory_space<vmem>>, vector<16x128xf32>
    tpu.vector_store %arg6[%c0_9, %c0_10], %9 {strides = array<i32>} : memref<16x128xf32, #tpu.memory_space<vmem>>, vector<16x128xf32>,
    %cst_11 = arith.constant 0.000000e+00 : f32
    %11 = vector.broadcast %cst_11 : f32 to vector<16x128xf32>
    %12 = arith.subf %11, %9 : vector<16x128xf32>
    %13 = math.exp %12 : vector<16x128xf32>
    %cst_12 = arith.constant 1.000000e+00 : f32
    %14 = vector.broadcast %cst_12 : f32 to vector<16x128xf32>
    %15 = arith.addf %14, %13 : vector<16x128xf32>
    %16 = tpu.reciprocal %15 {approx = true} : vector<16x128xf32> -> vector<16x128xf32>
    %17 = arith.mulf %9, %16 : vector<16x128xf32>
    %c0_13 = arith.constant 0 : index
    %c0_14 = arith.constant 0 : index
    %18 = vector.load %arg7[%c0_13, %c0_14] : memref<16x128xf32, #tpu.memory_space<vmem>>, vector<16x128xf32>
    tpu.vector_store %arg7[%c0_13, %c0_14], %17 {strides = array<i32>} : memref<16x128xf32, #tpu.memory_space<vmem>>, vector<16x128xf32>,
    return
  }
  func.func @transform_0(%arg0: i32) -> (i32, i32) {
    %c0_i32 = arith.constant 0 : i32
    %c0_i32_0 = arith.constant 0 : i32
    %c0_i32_1 = arith.constant 0 : i32
    return %c0_i32, %c0_i32_0 : i32, i32
  }
  func.func @transform_1(%arg0: i32) -> (i32, i32) {
    %c0_i32 = arith.constant 0 : i32
    %c0_i32_0 = arith.constant 0 : i32
    %c0_i32_1 = arith.constant 0 : i32
    return %c0_i32, %c0_i32_0 : i32, i32
  }
  func.func @transform_2(%arg0: i32) -> (i32, i32) {
    %c0_i32 = arith.constant 0 : i32
    %c0_i32_0 = arith.constant 0 : i32
    %c0_i32_1 = arith.constant 0 : i32
    return %c0_i32, %c0_i32_0 : i32, i32
  }
  func.func @transform_3(%arg0: i32) -> (i32, i32) {
    %c0_i32 = arith.constant 0 : i32
    %c0_i32_0 = arith.constant 0 : i32
    %c0_i32_1 = arith.constant 0 : i32
    return %c0_i32, %c0_i32_0 : i32, i32
  }
  func.func @transform_4(%arg0: i32) -> (i32, i32) {
    %c0_i32 = arith.constant 0 : i32
    %c0_i32_0 = arith.constant 0 : i32
    %c0_i32_1 = arith.constant 0 : i32
    return %c0_i32, %c0_i32_0 : i32, i32
  }
  func.func @transform_5(%arg0: i32) -> (i32, i32) {
    %c0_i32 = arith.constant 0 : i32
    %c0_i32_0 = arith.constant 0 : i32
    %c0_i32_1 = arith.constant 0 : i32
    return %c0_i32, %c0_i32_0 : i32, i32
  }
  func.func @transform_6(%arg0: i32) -> (i32, i32) {
    %c0_i32 = arith.constant 0 : i32
    %c0_i32_0 = arith.constant 0 : i32
    %c0_i32_1 = arith.constant 0 : i32
    return %c0_i32, %c0_i32_0 : i32, i32
  }
}

module attributes {stable_mosaic.version = 11 : i64} {
  func.func @_block_kernel(%arg0: i32, %arg1: memref<8x240xbf16, #tpu.memory_space<vmem>>, %arg2: memref<240x128xbf16, #tpu.memory_space<vmem>>, %arg3: memref<1x128xf32, #tpu.memory_space<vmem>>, %arg4: memref<8x128xf32, #tpu.memory_space<vmem>>) attributes {dimension_semantics = [#tpu.dimension_semantics<arbitrary>], iteration_bounds = array<i64: 1>, scalar_prefetch = 0 : i64, scratch_operands = 0 : i64, tpu.core_type = #tpu.core_type<tc>, window_params = [{pipeline_mode = #tpu.pipeline_mode<synchronous>, transform_indices = @transform_0, window_bounds = array<i64: 8, 240>}, {pipeline_mode = #tpu.pipeline_mode<synchronous>, transform_indices = @transform_1, window_bounds = array<i64: 240, 128>}, {pipeline_mode = #tpu.pipeline_mode<synchronous>, transform_indices = @transform_2, window_bounds = array<i64: 1, 128>}, {pipeline_mode = #tpu.pipeline_mode<synchronous>, transform_indices = @transform_3, window_bounds = array<i64: 8, 128>}]} {
    %c0 = arith.constant 0 : index
    %c0_0 = arith.constant 0 : index
    %0 = vector.load %arg1[%c0, %c0_0] : memref<8x240xbf16, #tpu.memory_space<vmem>>, vector<8x240xbf16>
    %c0_1 = arith.constant 0 : index
    %c0_2 = arith.constant 0 : index
    %1 = vector.load %arg2[%c0_1, %c0_2] : memref<240x128xbf16, #tpu.memory_space<vmem>>, vector<240x128xbf16>
    %cst = arith.constant dense<0.000000e+00> : vector<8x128xf32>
    %2 = tpu.matmul %0, %1, %cst {dimension_numbers = #tpu.dot_dimension_numbers<[1], [0], [0], [1], [0, 0, 1, 1], [], []>} : vector<8x240xbf16>, vector<240x128xbf16>, vector<8x128xf32> -> vector<8x128xf32>
    %c0_3 = arith.constant 0 : index
    %c0_4 = arith.constant 0 : index
    %3 = vector.load %arg3[%c0_3, %c0_4] : memref<1x128xf32, #tpu.memory_space<vmem>>, vector<1x128xf32>
    %4 = vector.broadcast %3 : vector<1x128xf32> to vector<8x128xf32>
    %5 = arith.addf %2, %4 : vector<8x128xf32>
    %cst_5 = arith.constant 0.000000e+00 : f32
    %6 = vector.broadcast %cst_5 : f32 to vector<8x128xf32>
    %7 = arith.subf %6, %5 : vector<8x128xf32>
    %8 = math.exp %7 : vector<8x128xf32>
    %cst_6 = arith.constant 1.000000e+00 : f32
    %9 = vector.broadcast %cst_6 : f32 to vector<8x128xf32>
    %10 = arith.addf %9, %8 : vector<8x128xf32>
    %11 = tpu.reciprocal %10 {approx = true} : vector<8x128xf32> -> vector<8x128xf32>
    %12 = arith.mulf %5, %11 : vector<8x128xf32>
    %c0_7 = arith.constant 0 : index
    %c0_8 = arith.constant 0 : index
    %13 = vector.load %arg4[%c0_7, %c0_8] : memref<8x128xf32, #tpu.memory_space<vmem>>, vector<8x128xf32>
    tpu.vector_store %arg4[%c0_7, %c0_8], %12 {strides = array<i32>} : memref<8x128xf32, #tpu.memory_space<vmem>>, vector<8x128xf32>,
    return
  }
  func.func @transform_0(%arg0: i32) -> (i32, i32) {
    %c0_i32 = arith.constant 0 : i32
    %c0_i32_0 = arith.constant 0 : i32
    %c0_i32_1 = arith.constant 0 : i32
    return %c0_i32, %c0_i32_0 : i32, i32
  }
  func.func @transform_1(%arg0: i32) -> (i32, i32) {
    %c0_i32 = arith.constant 0 : i32
    %c0_i32_0 = arith.constant 0 : i32
    %c0_i32_1 = arith.constant 0 : i32
    return %c0_i32, %c0_i32_0 : i32, i32
  }
  func.func @transform_2(%arg0: i32) -> (i32, i32) {
    %c0_i32 = arith.constant 0 : i32
    %c0_i32_0 = arith.constant 0 : i32
    %c0_i32_1 = arith.constant 0 : i32
    return %c0_i32, %c0_i32_0 : i32, i32
  }
  func.func @transform_3(%arg0: i32) -> (i32, i32) {
    %c0_i32 = arith.constant 0 : i32
    %c0_i32_0 = arith.constant 0 : i32
    %c0_i32_1 = arith.constant 0 : i32
    return %c0_i32, %c0_i32_0 : i32, i32
  }
}

module attributes {stable_mosaic.version = 11 : i64} {
  func.func @_block_kernel(%arg0: i32, %arg1: memref<8x288xbf16, #tpu.memory_space<vmem>>, %arg2: memref<288x128xbf16, #tpu.memory_space<vmem>>, %arg3: memref<1x128xf32, #tpu.memory_space<vmem>>, %arg4: memref<8x128xf32, #tpu.memory_space<vmem>>) attributes {dimension_semantics = [#tpu.dimension_semantics<arbitrary>], iteration_bounds = array<i64: 1>, scalar_prefetch = 0 : i64, scratch_operands = 0 : i64, tpu.core_type = #tpu.core_type<tc>, window_params = [{pipeline_mode = #tpu.pipeline_mode<synchronous>, transform_indices = @transform_0, window_bounds = array<i64: 8, 288>}, {pipeline_mode = #tpu.pipeline_mode<synchronous>, transform_indices = @transform_1, window_bounds = array<i64: 288, 128>}, {pipeline_mode = #tpu.pipeline_mode<synchronous>, transform_indices = @transform_2, window_bounds = array<i64: 1, 128>}, {pipeline_mode = #tpu.pipeline_mode<synchronous>, transform_indices = @transform_3, window_bounds = array<i64: 8, 128>}]} {
    %c0 = arith.constant 0 : index
    %c0_0 = arith.constant 0 : index
    %0 = vector.load %arg1[%c0, %c0_0] : memref<8x288xbf16, #tpu.memory_space<vmem>>, vector<8x288xbf16>
    %c0_1 = arith.constant 0 : index
    %c0_2 = arith.constant 0 : index
    %1 = vector.load %arg2[%c0_1, %c0_2] : memref<288x128xbf16, #tpu.memory_space<vmem>>, vector<288x128xbf16>
    %cst = arith.constant dense<0.000000e+00> : vector<8x128xf32>
    %2 = tpu.matmul %0, %1, %cst {dimension_numbers = #tpu.dot_dimension_numbers<[1], [0], [0], [1], [0, 0, 1, 1], [], []>} : vector<8x288xbf16>, vector<288x128xbf16>, vector<8x128xf32> -> vector<8x128xf32>
    %c0_3 = arith.constant 0 : index
    %c0_4 = arith.constant 0 : index
    %3 = vector.load %arg3[%c0_3, %c0_4] : memref<1x128xf32, #tpu.memory_space<vmem>>, vector<1x128xf32>
    %4 = vector.broadcast %3 : vector<1x128xf32> to vector<8x128xf32>
    %5 = arith.addf %2, %4 : vector<8x128xf32>
    %cst_5 = arith.constant 0.000000e+00 : f32
    %6 = vector.broadcast %cst_5 : f32 to vector<8x128xf32>
    %7 = arith.subf %6, %5 : vector<8x128xf32>
    %8 = math.exp %7 : vector<8x128xf32>
    %cst_6 = arith.constant 1.000000e+00 : f32
    %9 = vector.broadcast %cst_6 : f32 to vector<8x128xf32>
    %10 = arith.addf %9, %8 : vector<8x128xf32>
    %11 = tpu.reciprocal %10 {approx = true} : vector<8x128xf32> -> vector<8x128xf32>
    %12 = arith.mulf %5, %11 : vector<8x128xf32>
    %c0_7 = arith.constant 0 : index
    %c0_8 = arith.constant 0 : index
    %13 = vector.load %arg4[%c0_7, %c0_8] : memref<8x128xf32, #tpu.memory_space<vmem>>, vector<8x128xf32>
    tpu.vector_store %arg4[%c0_7, %c0_8], %12 {strides = array<i32>} : memref<8x128xf32, #tpu.memory_space<vmem>>, vector<8x128xf32>,
    return
  }
  func.func @transform_0(%arg0: i32) -> (i32, i32) {
    %c0_i32 = arith.constant 0 : i32
    %c0_i32_0 = arith.constant 0 : i32
    %c0_i32_1 = arith.constant 0 : i32
    return %c0_i32, %c0_i32_0 : i32, i32
  }
  func.func @transform_1(%arg0: i32) -> (i32, i32) {
    %c0_i32 = arith.constant 0 : i32
    %c0_i32_0 = arith.constant 0 : i32
    %c0_i32_1 = arith.constant 0 : i32
    return %c0_i32, %c0_i32_0 : i32, i32
  }
  func.func @transform_2(%arg0: i32) -> (i32, i32) {
    %c0_i32 = arith.constant 0 : i32
    %c0_i32_0 = arith.constant 0 : i32
    %c0_i32_1 = arith.constant 0 : i32
    return %c0_i32, %c0_i32_0 : i32, i32
  }
  func.func @transform_3(%arg0: i32) -> (i32, i32) {
    %c0_i32 = arith.constant 0 : i32
    %c0_i32_0 = arith.constant 0 : i32
    %c0_i32_1 = arith.constant 0 : i32
    return %c0_i32, %c0_i32_0 : i32, i32
  }
}

</mosaic_0001>

<llo_original>
// kernel: _lambda_.3
$region0: #{_lambda_.3}
  #allocation0 [shape = 'u32[]', space=smem, size = 0x4, offset = 0x4, fixed_abs, tag = 'smem constant byte address 0x4 - core index']
  #allocation1 [shape = 'u32[144,128]{1,0:T(1,128)}', space=vmem, size = 0x12000, scoped, tag = 'internal scratch']
  %s0 = inlined_call_operand.vmem [shape: bf16[16,216], index: 0, kind: input, shape index: {}]
  %s1 = inlined_call_operand.vmem [shape: bf16[216,128], index: 1, kind: input, shape index: {}]
  %s2 = inlined_call_operand.vmem [shape: f32[1,128], index: 2, kind: input, shape index: {}]
  %s3 = inlined_call_operand.vmem [shape: f32[1,128], index: 3, kind: input, shape index: {}]
  %s4 = inlined_call_operand.vmem [shape: f32[16,128], index: 4, kind: output, shape index: {0}]
  %s5 = inlined_call_operand.vmem [shape: f32[16,128], index: 5, kind: output, shape index: {1}]
  %s6 = inlined_call_operand.vmem [shape: f32[16,128], index: 6, kind: output, shape index: {2}]
  %7 = xla_tuple %s4, %s5, %s6
  %s8 = sld [smem:[#allocation0]]
  $region42: #{_lambda_.3} parent=0
    _
  %s10 = ssub.s32 1, %s8
  %s11 = scalar_select 0, %s10, %s8
  // Predicated region
  $region2: #{_lambda_.3} parent=0 // pred_check
    _
  $region3: #{_lambda_.3} parent=0 // pred_check_branch
    %13 = sbr.rel (0) target = $region5
  $region4: #{_lambda_.3} parent=0 // pred_region
    _
  $region5: #{_lambda_.3} parent=0 // pred_fallthru
    _
  // Predicated region
  $region6: #{_lambda_.3} parent=0 // pred_check
    _
  $region7: #{_lambda_.3} parent=0 // pred_check_branch
    %15 = sbr.rel (0) target = $region9
  $region8: #{_lambda_.3} parent=0 // pred_region
    _
  $region9: #{_lambda_.3} parent=0 // pred_fallthru
    _
  // Predicated region
  $region10: #{_lambda_.3} parent=0 // pred_check
    _
  $region11: #{_lambda_.3} parent=0 // pred_check_branch
    %17 = sbr.rel (0) target = $region13
  $region12: #{_lambda_.3} parent=0 // pred_region
    _
  $region13: #{_lambda_.3} parent=0 // pred_fallthru
    _
  // Predicated region
  $region14: #{_lambda_.3} parent=0 // pred_check
    _
  $region15: #{_lambda_.3} parent=0 // pred_check_branch
    %19 = sbr.rel (0) target = $region17
  $region16: #{_lambda_.3} parent=0 // pred_region
    _
  $region17: #{_lambda_.3} parent=0 // pred_fallthru
    _
  %v21 = vld [vmem:[%s0] sm:$0xff]
  %v22 = vld [vmem:[%s0 + $0x8] sm:$0xff]
  %v23 = vld [vmem:[%s1] sm:$0xf]
  %v24 = vld [vmem:[%s1 + $0x4] sm:$0xf]
  %v25 = vld [vmem:[%s1 + $0x8] sm:$0xf]
  %v26 = vld [vmem:[%s1 + $0xc] sm:$0xf]
  %v27 = vld [vmem:[%s1 + $0x10] sm:$0xf]
  %v28 = vld [vmem:[%s1 + $0x14] sm:$0xf]
  %v29 = vld [vmem:[%s1 + $0x18] sm:$0xf]
  %v30 = vld [vmem:[%s1 + $0x1c] sm:$0xf]
  %v31 = vld [vmem:[%s1 + $0x20] sm:$0xf]
  %v32 = vld [vmem:[%s1 + $0x24] sm:$0xf]
  %v33 = vld [vmem:[%s1 + $0x28] sm:$0xf]
  %v34 = vld [vmem:[%s1 + $0x2c] sm:$0xf]
  %v35 = vld [vmem:[%s1 + $0x30] sm:$0xf]
  %v36 = vld [vmem:[%s1 + $0x34] sm:$0xf]
  %v37 = vld [vmem:[%s1 + $0x38] sm:$0xf]
  %v38 = vld [vmem:[%s1 + $0x3c] sm:$0xf]
  %v39 = vld [vmem:[%s1 + $0x40] sm:$0xf]
  %v40 = vld [vmem:[%s1 + $0x44] sm:$0xf]
  %v41 = vld [vmem:[%s1 + $0x48] sm:$0xf]
  %v42 = vld [vmem:[%s1 + $0x4c] sm:$0xf]
  %v43 = vld [vmem:[%s1 + $0x50] sm:$0xf]
  %v44 = vld [vmem:[%s1 + $0x54] sm:$0xf]
  %v45 = vld [vmem:[%s1 + $0x58] sm:$0xf]
  %v46 = vld [vmem:[%s1 + $0x5c] sm:$0xf]
  %v47 = vld [vmem:[%s1 + $0x60] sm:$0xf]
  %v48 = vld [vmem:[%s1 + $0x64] sm:$0xf]
  %v49 = vld [vmem:[%s1 + $0x68] sm:$0xf]
  %v52 = vunpack.c.l.b16 %v21
  %v53 = vunpack.c.h.b16 %v21
  %v54 = vunpack.c.l.b16 %v22
  %v55 = vunpack.c.h.b16 %v22
  %v56 = vpack.c.b16 %v54, %v52
  %v57 = vpack.c.b16 %v55, %v53
  %v86 = vunpack.c.l.b16 %v23
  %v87 = vunpack.c.l.b16 %v24
  %v88 = vunpack.c.l.b16 %v25
  %v89 = vunpack.c.l.b16 %v26
  %v90 = vunpack.c.l.b16 %v27
  %v91 = vunpack.c.l.b16 %v28
  %v92 = vunpack.c.l.b16 %v29
  %v93 = vunpack.c.l.b16 %v30
  %v94 = vunpack.c.l.b16 %v31
  %v95 = vunpack.c.l.b16 %v32
  %v96 = vunpack.c.l.b16 %v33
  %v97 = vunpack.c.l.b16 %v34
  %v98 = vunpack.c.l.b16 %v35
  %v99 = vunpack.c.l.b16 %v36
  %v100 = vunpack.c.l.b16 %v37
  %v101 = vunpack.c.l.b16 %v38
  %v102 = vunpack.c.l.b16 %v39
  %v103 = vunpack.c.l.b16 %v40
  %v104 = vunpack.c.l.b16 %v41
  %v105 = vunpack.c.l.b16 %v42
  %v106 = vunpack.c.l.b16 %v43
  %v107 = vunpack.c.l.b16 %v44
  %v108 = vunpack.c.l.b16 %v45
  %v109 = vunpack.c.l.b16 %v46
  %v110 = vunpack.c.l.b16 %v47
  %v111 = vunpack.c.l.b16 %v48
  %v112 = vunpack.c.l.b16 %v49
  %v113 = vpack.c.b16 %v87, %v86
  %v114 = vpack.c.b16 %v89, %v88
  %v115 = vpack.c.b16 %v91, %v90
  %v116 = vpack.c.b16 %v93, %v92
  %v117 = vpack.c.b16 %v95, %v94
  %v118 = vpack.c.b16 %v97, %v96
  %v119 = vpack.c.b16 %v99, %v98
  %v120 = vpack.c.b16 %v101, %v100
  %v121 = vpack.c.b16 %v103, %v102
  %v122 = vpack.c.b16 %v105, %v104
  %v123 = vpack.c.b16 %v107, %v106
  %v124 = vpack.c.b16 %v109, %v108
  %v125 = vpack.c.b16 %v111, %v110
  %v126 = vpack.c.b16 %v112, %v112
  %vm140 = vcmask 719872
  %v142 = vsel %vm140, %v57, 0
  %vm144 = vcmask 1043456
  %v146 = vsel %vm144, %v126, 0
  %148 = vmatprep.subr.bf16.mxu0 0
  %149 = vmatpush1.bf16.msra.mxu0 %v120
  %150 = vmatprep.subr.bf16.mxu0 0
  %151 = vmatpush1.bf16.msra.mxu0 %v119
  %152 = vmatprep.subr.bf16.mxu0 0
  %153 = vmatpush1.bf16.msra.mxu0 %v118
  %154 = vmatprep.subr.bf16.mxu0 0
  %155 = vmatpush1.bf16.msra.mxu0 %v117
  %156 = vmatprep.subr.bf16.mxu0 0
  %157 = vmatpush1.bf16.msra.mxu0 %v116
  %158 = vmatprep.subr.bf16.mxu0 0
  %159 = vmatpush1.bf16.msra.mxu0 %v115
  %160 = vmatprep.subr.bf16.mxu0 0
  %161 = vmatpush1.bf16.msra.mxu0 %v114
  %162 = vmatprep.subr.bf16.mxu0 0
  %163 = vmatpush1.bf16.msra.mxu0 %v113
  %164 = vmatprep.subr.bf16.mxu0 0
  %165 = vmatpush2.bf16.msra.mxu0 0
  %166 = vmatprep.subr.bf16.mxu0 0
  %167 = vmatpush2.bf16.msra.mxu0 0
  %168 = vmatprep.subr.bf16.mxu0 0
  %169 = vmatpush2.bf16.msra.mxu0 %v146
  %170 = vmatprep.subr.bf16.mxu0 0
  %171 = vmatpush2.bf16.msra.mxu0 %v125
  %172 = vmatprep.subr.bf16.mxu0 0
  %173 = vmatpush2.bf16.msra.mxu0 %v124
  %174 = vmatprep.subr.bf16.mxu0 0
  %175 = vmatpush2.bf16.msra.mxu0 %v123
  %176 = vmatprep.subr.bf16.mxu0 0
  %177 = vmatpush2.bf16.msra.mxu0 %v122
  %178 = vmatprep.subr.bf16.mxu0 0
  %179 = vmatpush2.bf16.msra.mxu0 %v121
  %180 = vmatprep.mubr.bf16.mxu0 %v142
  %181 = vmatmul.mubr.bf16.gmra.mxu0 %v56
  %v182 = vpop.f32.mrf.mxu0
  %v183 = vadd.f32 0.0, %v182
  %v184 = vpop.f32.mrf.mxu0
  %v185 = vpop.f32.mrf.mxu0
  %v186 = vadd.f32 0.0, %v185
  %v187 = vpop.f32.mrf.mxu0
  %188 = vdwg.mxu0
  %189 = vst [vmem:[%s4] sm:$0xff] %v183
  %190 = vst [vmem:[%s4 + $0x8] sm:$0xff] %v186
  %v191 = vld [vmem:[%s2] sm:$0x1]
  %v193 = vlaneseq
  %v194 = vshrl.u32 %v193, 7
  %v195 = vsub.s32 0, %v194
  %v196 = vrot.slane %v191, %v195
  %v198 = vmul.f32 %v183, %v196
  %v199 = vmul.f32 %v186, %v196
  %v200 = vld [vmem:[%s3] sm:$0x1]
  %v202 = vlaneseq
  %v203 = vshrl.u32 %v202, 7
  %v204 = vsub.s32 0, %v203
  %v205 = vrot.slane %v200, %v204
  %v207 = vadd.f32 %v198, %v205
  %v208 = vadd.f32 %v199, %v205
  %209 = vst [vmem:[%s5] sm:$0xff] %v207
  %210 = vst [vmem:[%s5 + $0x8] sm:$0xff] %v208
  %v211 = vsub.f32 0.0, %v207
  %v212 = vsub.f32 0.0, %v208
  %v213 = vmul.f32 %v211, 1.442695
  %v214 = vpow.pop %v213
  %v215 = vmul.f32 %v212, 1.442695
  %v216 = vpow.pop %v215
  %v217 = vadd.f32 %v214, 1.0
  %v218 = vadd.f32 %v216, 1.0
  %v219 = vrcp.pop %v217
  %v220 = vrcp.pop %v218
  %v221 = vmul.f32 %v207, %v219
  %v222 = vmul.f32 %v208, %v220
  %223 = vst [vmem:[%s6] sm:$0xff] %v221
  %224 = vst [vmem:[%s6 + $0x8] sm:$0xff] %v222
  // Predicated region
  $region18: #{_lambda_.3} parent=0 // pred_check
    _
  $region19: #{_lambda_.3} parent=0 // pred_check_branch
    %226 = sbr.rel (0) target = $region21
  $region20: #{_lambda_.3} parent=0 // pred_region
    _
  $region21: #{_lambda_.3} parent=0 // pred_fallthru
    _
  // Predicated region
  $region22: #{_lambda_.3} parent=0 // pred_check
    _
  $region23: #{_lambda_.3} parent=0 // pred_check_branch
    %228 = sbr.rel (0) target = $region25
  $region24: #{_lambda_.3} parent=0 // pred_region
    _
  $region25: #{_lambda_.3} parent=0 // pred_fallthru
    _
  // Predicated region
  $region26: #{_lambda_.3} parent=0 // pred_check
    _
  $region27: #{_lambda_.3} parent=0 // pred_check_branch
    %230 = sbr.rel (0) target = $region29
  $region28: #{_lambda_.3} parent=0 // pred_region
    _
  $region29: #{_lambda_.3} parent=0 // pred_fallthru
    _
  // Predicated region
  $region30: #{_lambda_.3} parent=0 // pred_check
    _
  $region31: #{_lambda_.3} parent=0 // pred_check_branch
    %232 = sbr.rel (0) target = $region33
  $region32: #{_lambda_.3} parent=0 // pred_region
    _
  $region33: #{_lambda_.3} parent=0 // pred_fallthru
    _
  // Predicated region
  $region34: #{_lambda_.3} parent=0 // pred_check
    _
  $region35: #{_lambda_.3} parent=0 // pred_check_branch
    %234 = sbr.rel (0) target = $region37
  $region36: #{_lambda_.3} parent=0 // pred_region
    _
  $region37: #{_lambda_.3} parent=0 // pred_fallthru
    _
  // Predicated region
  $region38: #{_lambda_.3} parent=0 // pred_check
    _
  $region39: #{_lambda_.3} parent=0 // pred_check_branch
    %236 = sbr.rel (0) target = $region41
  $region40: #{_lambda_.3} parent=0 // pred_region
    _
  $region41: #{_lambda_.3} parent=0 // pred_fallthru
    _

// kernel: _lambda_.4
$region0: #{_lambda_.4}
  #allocation0 [shape = 'u32[]', space=smem, size = 0x4, offset = 0x4, fixed_abs, tag = 'smem constant byte address 0x4 - core index']
  #allocation1 [shape = 'u32[144,128]{1,0:T(1,128)}', space=vmem, size = 0x12000, scoped, tag = 'internal scratch']
  %s0 = inlined_call_operand.vmem [shape: bf16[8,240], index: 0, kind: input, shape index: {}]
  %s1 = inlined_call_operand.vmem [shape: bf16[240,128], index: 1, kind: input, shape index: {}]
  %s2 = inlined_call_operand.vmem [shape: f32[1,128], index: 2, kind: input, shape index: {}]
  %s3 = inlined_call_operand.vmem [shape: f32[8,128], index: 3, kind: output, shape index: {}]
  %s4 = sld [smem:[#allocation0]]
  $region22: #{_lambda_.4} parent=0
    _
  %s6 = ssub.s32 1, %s4
  %s7 = scalar_select 0, %s6, %s4
  // Predicated region
  $region2: #{_lambda_.4} parent=0 // pred_check
    _
  $region3: #{_lambda_.4} parent=0 // pred_check_branch
    %9 = sbr.rel (0) target = $region5
  $region4: #{_lambda_.4} parent=0 // pred_region
    _
  $region5: #{_lambda_.4} parent=0 // pred_fallthru
    _
  // Predicated region
  $region6: #{_lambda_.4} parent=0 // pred_check
    _
  $region7: #{_lambda_.4} parent=0 // pred_check_branch
    %11 = sbr.rel (0) target = $region9
  $region8: #{_lambda_.4} parent=0 // pred_region
    _
  $region9: #{_lambda_.4} parent=0 // pred_fallthru
    _
  // Predicated region
  $region10: #{_lambda_.4} parent=0 // pred_check
    _
  $region11: #{_lambda_.4} parent=0 // pred_check_branch
    %13 = sbr.rel (0) target = $region13
  $region12: #{_lambda_.4} parent=0 // pred_region
    _
  $region13: #{_lambda_.4} parent=0 // pred_fallthru
    _
  %v15 = vld [vmem:[%s0] sm:$0xff]
  %v16 = vld [vmem:[%s1] sm:$0xf]
  %v17 = vld [vmem:[%s1 + $0x4] sm:$0xf]
  %v18 = vld [vmem:[%s1 + $0x8] sm:$0xf]
  %v19 = vld [vmem:[%s1 + $0xc] sm:$0xf]
  %v20 = vld [vmem:[%s1 + $0x10] sm:$0xf]
  %v21 = vld [vmem:[%s1 + $0x14] sm:$0xf]
  %v22 = vld [vmem:[%s1 + $0x18] sm:$0xf]
  %v23 = vld [vmem:[%s1 + $0x1c] sm:$0xf]
  %v24 = vld [vmem:[%s1 + $0x20] sm:$0xf]
  %v25 = vld [vmem:[%s1 + $0x24] sm:$0xf]
  %v26 = vld [vmem:[%s1 + $0x28] sm:$0xf]
  %v27 = vld [vmem:[%s1 + $0x2c] sm:$0xf]
  %v28 = vld [vmem:[%s1 + $0x30] sm:$0xf]
  %v29 = vld [vmem:[%s1 + $0x34] sm:$0xf]
  %v30 = vld [vmem:[%s1 + $0x38] sm:$0xf]
  %v31 = vld [vmem:[%s1 + $0x3c] sm:$0xf]
  %v32 = vld [vmem:[%s1 + $0x40] sm:$0xf]
  %v33 = vld [vmem:[%s1 + $0x44] sm:$0xf]
  %v34 = vld [vmem:[%s1 + $0x48] sm:$0xf]
  %v35 = vld [vmem:[%s1 + $0x4c] sm:$0xf]
  %v36 = vld [vmem:[%s1 + $0x50] sm:$0xf]
  %v37 = vld [vmem:[%s1 + $0x54] sm:$0xf]
  %v38 = vld [vmem:[%s1 + $0x58] sm:$0xf]
  %v39 = vld [vmem:[%s1 + $0x5c] sm:$0xf]
  %v40 = vld [vmem:[%s1 + $0x60] sm:$0xf]
  %v41 = vld [vmem:[%s1 + $0x64] sm:$0xf]
  %v42 = vld [vmem:[%s1 + $0x68] sm:$0xf]
  %v43 = vld [vmem:[%s1 + $0x6c] sm:$0xf]
  %v44 = vld [vmem:[%s1 + $0x70] sm:$0xf]
  %v45 = vld [vmem:[%s1 + $0x74] sm:$0xf]
  %v46 = vld [vmem:[%s2] sm:$0x1]
  %v48 = vlaneseq
  %v49 = vshrl.u32 %v48, 7
  %v50 = vsub.s32 0, %v49
  %v51 = vrot.slane %v46, %v50
  %v54 = vunpack.c.l.b16 %v15
  %v55 = vunpack.c.h.b16 %v15
  %v56 = vpack.c.b16 %v54, %v54
  %v57 = vpack.c.b16 %v55, %v55
  %v89 = vunpack.c.l.b16 %v16
  %v90 = vunpack.c.l.b16 %v17
  %v91 = vunpack.c.l.b16 %v18
  %v92 = vunpack.c.l.b16 %v19
  %v93 = vunpack.c.l.b16 %v20
  %v94 = vunpack.c.l.b16 %v21
  %v95 = vunpack.c.l.b16 %v22
  %v96 = vunpack.c.l.b16 %v23
  %v97 = vunpack.c.l.b16 %v24
  %v98 = vunpack.c.l.b16 %v25
  %v99 = vunpack.c.l.b16 %v26
  %v100 = vunpack.c.l.b16 %v27
  %v101 = vunpack.c.l.b16 %v28
  %v102 = vunpack.c.l.b16 %v29
  %v103 = vunpack.c.l.b16 %v30
  %v104 = vunpack.c.l.b16 %v31
  %v105 = vunpack.c.l.b16 %v32
  %v106 = vunpack.c.l.b16 %v33
  %v107 = vunpack.c.l.b16 %v34
  %v108 = vunpack.c.l.b16 %v35
  %v109 = vunpack.c.l.b16 %v36
  %v110 = vunpack.c.l.b16 %v37
  %v111 = vunpack.c.l.b16 %v38
  %v112 = vunpack.c.l.b16 %v39
  %v113 = vunpack.c.l.b16 %v40
  %v114 = vunpack.c.l.b16 %v41
  %v115 = vunpack.c.l.b16 %v42
  %v116 = vunpack.c.l.b16 %v43
  %v117 = vunpack.c.l.b16 %v44
  %v118 = vunpack.c.l.b16 %v45
  %v119 = vpack.c.b16 %v90, %v89
  %v120 = vpack.c.b16 %v92, %v91
  %v121 = vpack.c.b16 %v94, %v93
  %v122 = vpack.c.b16 %v96, %v95
  %v123 = vpack.c.b16 %v98, %v97
  %v124 = vpack.c.b16 %v100, %v99
  %v125 = vpack.c.b16 %v102, %v101
  %v126 = vpack.c.b16 %v104, %v103
  %v127 = vpack.c.b16 %v106, %v105
  %v128 = vpack.c.b16 %v108, %v107
  %v129 = vpack.c.b16 %v110, %v109
  %v130 = vpack.c.b16 %v112, %v111
  %v131 = vpack.c.b16 %v114, %v113
  %v132 = vpack.c.b16 %v116, %v115
  %v133 = vpack.c.b16 %v118, %v117
  %vm149 = vcmask 916480
  %v151 = vsel %vm149, %v57, 0
  %153 = vmatprep.subr.bf16.mxu0 0
  %154 = vmatpush1.bf16.msra.mxu0 %v126
  %155 = vmatprep.subr.bf16.mxu0 0
  %156 = vmatpush1.bf16.msra.mxu0 %v125
  %157 = vmatprep.subr.bf16.mxu0 0
  %158 = vmatpush1.bf16.msra.mxu0 %v124
  %159 = vmatprep.subr.bf16.mxu0 0
  %160 = vmatpush1.bf16.msra.mxu0 %v123
  %161 = vmatprep.subr.bf16.mxu0 0
  %162 = vmatpush1.bf16.msra.mxu0 %v122
  %163 = vmatprep.subr.bf16.mxu0 0
  %164 = vmatpush1.bf16.msra.mxu0 %v121
  %165 = vmatprep.subr.bf16.mxu0 0
  %166 = vmatpush1.bf16.msra.mxu0 %v120
  %167 = vmatprep.subr.bf16.mxu0 0
  %168 = vmatpush1.bf16.msra.mxu0 %v119
  %169 = vmatprep.subr.bf16.mxu0 0
  %170 = vmatpush2.bf16.msra.mxu0 0
  %171 = vmatprep.subr.bf16.mxu0 0
  %172 = vmatpush2.bf16.msra.mxu0 %v133
  %173 = vmatprep.subr.bf16.mxu0 0
  %174 = vmatpush2.bf16.msra.mxu0 %v132
  %175 = vmatprep.subr.bf16.mxu0 0
  %176 = vmatpush2.bf16.msra.mxu0 %v131
  %177 = vmatprep.subr.bf16.mxu0 0
  %178 = vmatpush2.bf16.msra.mxu0 %v130
  %179 = vmatprep.subr.bf16.mxu0 0
  %180 = vmatpush2.bf16.msra.mxu0 %v129
  %181 = vmatprep.subr.bf16.mxu0 0
  %182 = vmatpush2.bf16.msra.mxu0 %v128
  %183 = vmatprep.subr.bf16.mxu0 0
  %184 = vmatpush2.bf16.msra.mxu0 %v127
  %185 = vmatprep.mubr.bf16.mxu0 %v151
  %186 = vmatmul.mubr.bf16.gmra.mxu0 %v56
  %v187 = vpop.f32.mrf.mxu0
  %v188 = vadd.f32 %v51, %v187
  %v189 = vpop.f32.mrf.mxu0
  %v190 = vpop.f32.mrf.mxu0
  %v191 = vpop.f32.mrf.mxu0
  %192 = vdwg.mxu0
  %v193 = vsub.f32 0.0, %v188
  %v194 = vmul.f32 %v193, 1.442695
  %v195 = vpow.pop %v194
  %v196 = vadd.f32 %v195, 1.0
  %v197 = vrcp.pop %v196
  %v198 = vmul.f32 %v188, %v197
  %199 = vst [vmem:[%s3] sm:$0xff] %v198
  // Predicated region
  $region14: #{_lambda_.4} parent=0 // pred_check
    _
  $region15: #{_lambda_.4} parent=0 // pred_check_branch
    %201 = sbr.rel (0) target = $region17
  $region16: #{_lambda_.4} parent=0 // pred_region
    _
  $region17: #{_lambda_.4} parent=0 // pred_fallthru
    _
  // Predicated region
  $region18: #{_lambda_.4} parent=0 // pred_check
    _
  $region19: #{_lambda_.4} parent=0 // pred_check_branch
    %203 = sbr.rel (0) target = $region21
  $region20: #{_lambda_.4} parent=0 // pred_region
    _
  $region21: #{_lambda_.4} parent=0 // pred_fallthru
    _

// kernel: _lambda_.5
$region0: #{_lambda_.5}
  #allocation0 [shape = 'u32[]', space=smem, size = 0x4, offset = 0x4, fixed_abs, tag = 'smem constant byte address 0x4 - core index']
  #allocation1 [shape = 'u32[144,128]{1,0:T(1,128)}', space=vmem, size = 0x12000, scoped, tag = 'internal scratch']
  %s0 = inlined_call_operand.vmem [shape: bf16[8,288], index: 0, kind: input, shape index: {}]
  %s1 = inlined_call_operand.vmem [shape: bf16[288,128], index: 1, kind: input, shape index: {}]
  %s2 = inlined_call_operand.vmem [shape: f32[1,128], index: 2, kind: input, shape index: {}]
  %s3 = inlined_call_operand.vmem [shape: f32[8,128], index: 3, kind: output, shape index: {}]
  %s4 = sld [smem:[#allocation0]]
  $region22: #{_lambda_.5} parent=0
    _
  %s6 = ssub.s32 1, %s4
  %s7 = scalar_select 0, %s6, %s4
  // Predicated region
  $region2: #{_lambda_.5} parent=0 // pred_check
    _
  $region3: #{_lambda_.5} parent=0 // pred_check_branch
    %9 = sbr.rel (0) target = $region5
  $region4: #{_lambda_.5} parent=0 // pred_region
    _
  $region5: #{_lambda_.5} parent=0 // pred_fallthru
    _
  // Predicated region
  $region6: #{_lambda_.5} parent=0 // pred_check
    _
  $region7: #{_lambda_.5} parent=0 // pred_check_branch
    %11 = sbr.rel (0) target = $region9
  $region8: #{_lambda_.5} parent=0 // pred_region
    _
  $region9: #{_lambda_.5} parent=0 // pred_fallthru
    _
  // Predicated region
  $region10: #{_lambda_.5} parent=0 // pred_check
    _
  $region11: #{_lambda_.5} parent=0 // pred_check_branch
    %13 = sbr.rel (0) target = $region13
  $region12: #{_lambda_.5} parent=0 // pred_region
    _
  $region13: #{_lambda_.5} parent=0 // pred_fallthru
    _
  %v15 = vld [vmem:[%s0] sm:$0xff]
  %v16 = vld [vmem:[%s0 + $0x8] sm:$0xf]
  %v17 = vld [vmem:[%s1] sm:$0xf]
  %v18 = vld [vmem:[%s1 + $0x4] sm:$0xf]
  %v19 = vld [vmem:[%s1 + $0x8] sm:$0xf]
  %v20 = vld [vmem:[%s1 + $0xc] sm:$0xf]
  %v21 = vld [vmem:[%s1 + $0x10] sm:$0xf]
  %v22 = vld [vmem:[%s1 + $0x14] sm:$0xf]
  %v23 = vld [vmem:[%s1 + $0x18] sm:$0xf]
  %v24 = vld [vmem:[%s1 + $0x1c] sm:$0xf]
  %v25 = vld [vmem:[%s1 + $0x20] sm:$0xf]
  %v26 = vld [vmem:[%s1 + $0x24] sm:$0xf]
  %v27 = vld [vmem:[%s1 + $0x28] sm:$0xf]
  %v28 = vld [vmem:[%s1 + $0x2c] sm:$0xf]
  %v29 = vld [vmem:[%s1 + $0x30] sm:$0xf]
  %v30 = vld [vmem:[%s1 + $0x34] sm:$0xf]
  %v31 = vld [vmem:[%s1 + $0x38] sm:$0xf]
  %v32 = vld [vmem:[%s1 + $0x3c] sm:$0xf]
  %v33 = vld [vmem:[%s1 + $0x40] sm:$0xf]
  %v34 = vld [vmem:[%s1 + $0x44] sm:$0xf]
  %v35 = vld [vmem:[%s1 + $0x48] sm:$0xf]
  %v36 = vld [vmem:[%s1 + $0x4c] sm:$0xf]
  %v37 = vld [vmem:[%s1 + $0x50] sm:$0xf]
  %v38 = vld [vmem:[%s1 + $0x54] sm:$0xf]
  %v39 = vld [vmem:[%s1 + $0x58] sm:$0xf]
  %v40 = vld [vmem:[%s1 + $0x5c] sm:$0xf]
  %v41 = vld [vmem:[%s1 + $0x60] sm:$0xf]
  %v42 = vld [vmem:[%s1 + $0x64] sm:$0xf]
  %v43 = vld [vmem:[%s1 + $0x68] sm:$0xf]
  %v44 = vld [vmem:[%s1 + $0x6c] sm:$0xf]
  %v45 = vld [vmem:[%s1 + $0x70] sm:$0xf]
  %v46 = vld [vmem:[%s1 + $0x74] sm:$0xf]
  %v47 = vld [vmem:[%s1 + $0x78] sm:$0xf]
  %v48 = vld [vmem:[%s1 + $0x7c] sm:$0xf]
  %v49 = vld [vmem:[%s1 + $0x80] sm:$0xf]
  %v50 = vld [vmem:[%s1 + $0x84] sm:$0xf]
  %v51 = vld [vmem:[%s1 + $0x88] sm:$0xf]
  %v52 = vld [vmem:[%s1 + $0x8c] sm:$0xf]
  %v53 = vld [vmem:[%s2] sm:$0x1]
  %v55 = vlaneseq
  %v56 = vshrl.u32 %v55, 7
  %v57 = vsub.s32 0, %v56
  %v58 = vrot.slane %v53, %v57
  %v62 = vunpack.c.l.b16 %v15
  %v63 = vunpack.c.h.b16 %v15
  %v64 = vunpack.c.l.b16 %v16
  %v65 = vpack.c.b16 %v62, %v62
  %v66 = vpack.c.b16 %v63, %v63
  %v67 = vpack.c.b16 %v64, %v64
  %v106 = vunpack.c.l.b16 %v17
  %v107 = vunpack.c.l.b16 %v18
  %v108 = vunpack.c.l.b16 %v19
  %v109 = vunpack.c.l.b16 %v20
  %v110 = vunpack.c.l.b16 %v21
  %v111 = vunpack.c.l.b16 %v22
  %v112 = vunpack.c.l.b16 %v23
  %v113 = vunpack.c.l.b16 %v24
  %v114 = vunpack.c.l.b16 %v25
  %v115 = vunpack.c.l.b16 %v26
  %v116 = vunpack.c.l.b16 %v27
  %v117 = vunpack.c.l.b16 %v28
  %v118 = vunpack.c.l.b16 %v29
  %v119 = vunpack.c.l.b16 %v30
  %v120 = vunpack.c.l.b16 %v31
  %v121 = vunpack.c.l.b16 %v32
  %v122 = vunpack.c.l.b16 %v33
  %v123 = vunpack.c.l.b16 %v34
  %v124 = vunpack.c.l.b16 %v35
  %v125 = vunpack.c.l.b16 %v36
  %v126 = vunpack.c.l.b16 %v37
  %v127 = vunpack.c.l.b16 %v38
  %v128 = vunpack.c.l.b16 %v39
  %v129 = vunpack.c.l.b16 %v40
  %v130 = vunpack.c.l.b16 %v41
  %v131 = vunpack.c.l.b16 %v42
  %v132 = vunpack.c.l.b16 %v43
  %v133 = vunpack.c.l.b16 %v44
  %v134 = vunpack.c.l.b16 %v45
  %v135 = vunpack.c.l.b16 %v46
  %v136 = vunpack.c.l.b16 %v47
  %v137 = vunpack.c.l.b16 %v48
  %v138 = vunpack.c.l.b16 %v49
  %v139 = vunpack.c.l.b16 %v50
  %v140 = vunpack.c.l.b16 %v51
  %v141 = vunpack.c.l.b16 %v52
  %v142 = vpack.c.b16 %v107, %v106
  %v143 = vpack.c.b16 %v109, %v108
  %v144 = vpack.c.b16 %v111, %v110
  %v145 = vpack.c.b16 %v113, %v112
  %v146 = vpack.c.b16 %v115, %v114
  %v147 = vpack.c.b16 %v117, %v116
  %v148 = vpack.c.b16 %v119, %v118
  %v149 = vpack.c.b16 %v121, %v120
  %v150 = vpack.c.b16 %v123, %v122
  %v151 = vpack.c.b16 %v125, %v124
  %v152 = vpack.c.b16 %v127, %v126
  %v153 = vpack.c.b16 %v129, %v128
  %v154 = vpack.c.b16 %v131, %v130
  %v155 = vpack.c.b16 %v133, %v132
  %v156 = vpack.c.b16 %v135, %v134
  %v157 = vpack.c.b16 %v137, %v136
  %v158 = vpack.c.b16 %v139, %v138
  %v159 = vpack.c.b16 %v141, %v140
  %vm178 = vcmask 261120
  %v180 = vsel %vm178, %v67, 0
  %182 = vmatprep.subr.bf16.mxu0 0
  %183 = vmatpush1.bf16.msra.mxu0 %v149
  %184 = vmatprep.subr.bf16.mxu0 0
  %185 = vmatpush1.bf16.msra.mxu0 %v148
  %186 = vmatprep.subr.bf16.mxu0 0
  %187 = vmatpush1.bf16.msra.mxu0 %v147
  %188 = vmatprep.subr.bf16.mxu0 0
  %189 = vmatpush1.bf16.msra.mxu0 %v146
  %190 = vmatprep.subr.bf16.mxu0 0
  %191 = vmatpush1.bf16.msra.mxu0 %v145
  %192 = vmatprep.subr.bf16.mxu0 0
  %193 = vmatpush1.bf16.msra.mxu0 %v144
  %194 = vmatprep.subr.bf16.mxu0 0
  %195 = vmatpush1.bf16.msra.mxu0 %v143
  %196 = vmatprep.subr.bf16.mxu0 0
  %197 = vmatpush1.bf16.msra.mxu0 %v142
  %198 = vmatprep.subr.bf16.mxu0 0
  %199 = vmatpush2.bf16.msra.mxu0 %v157
  %200 = vmatprep.subr.bf16.mxu0 0
  %201 = vmatpush2.bf16.msra.mxu0 %v156
  %202 = vmatprep.subr.bf16.mxu0 0
  %203 = vmatpush2.bf16.msra.mxu0 %v155
  %204 = vmatprep.subr.bf16.mxu0 0
  %205 = vmatpush2.bf16.msra.mxu0 %v154
  %206 = vmatprep.subr.bf16.mxu0 0
  %207 = vmatpush2.bf16.msra.mxu0 %v153
  %208 = vmatprep.subr.bf16.mxu0 0
  %209 = vmatpush2.bf16.msra.mxu0 %v152
  %210 = vmatprep.subr.bf16.mxu0 0
  %211 = vmatpush2.bf16.msra.mxu0 %v151
  %212 = vmatprep.subr.bf16.mxu0 0
  %213 = vmatpush2.bf16.msra.mxu0 %v150
  %214 = vmatprep.mubr.bf16.mxu0 %v66
  %215 = vmatmul.mubr.bf16.gmra.mxu0 %v65
  %v216 = vpop.f32.mrf.mxu0
  %v217 = vadd.f32 %v58, %v216
  %v218 = vpop.f32.mrf.mxu0
  %v219 = vpop.f32.mrf.mxu0
  %v220 = vpop.f32.mrf.mxu0
  %221 = vdwg.mxu0
  %222 = vmatprep.subr.bf16.mxu0 0
  %223 = vmatpush1.bf16.msra.mxu0 0
  %224 = vmatprep.subr.bf16.mxu0 0
  %225 = vmatpush1.bf16.msra.mxu0 0
  %226 = vmatprep.subr.bf16.mxu0 0
  %227 = vmatpush1.bf16.msra.mxu0 0
  %228 = vmatprep.subr.bf16.mxu0 0
  %229 = vmatpush1.bf16.msra.mxu0 0
  %230 = vmatprep.subr.bf16.mxu0 0
  %231 = vmatpush1.bf16.msra.mxu0 0
  %232 = vmatprep.subr.bf16.mxu0 0
  %233 = vmatpush1.bf16.msra.mxu0 0
  %234 = vmatprep.subr.bf16.mxu0 0
  %235 = vmatpush1.bf16.msra.mxu0 %v159
  %236 = vmatprep.subr.bf16.mxu0 0
  %237 = vmatpush1.bf16.msra.mxu0 %v158
  %238 = vmatprep.subr.bf16.mxu0 0
  %239 = vmatpush2.bf16.msra.mxu0 0
  %240 = vmatprep.subr.bf16.mxu0 0
  %241 = vmatpush2.bf16.msra.mxu0 0
  %242 = vmatprep.subr.bf16.mxu0 0
  %243 = vmatpush2.bf16.msra.mxu0 0
  %244 = vmatprep.subr.bf16.mxu0 0
  %245 = vmatpush2.bf16.msra.mxu0 0
  %246 = vmatprep.subr.bf16.mxu0 0
  %247 = vmatpush2.bf16.msra.mxu0 0
  %248 = vmatprep.subr.bf16.mxu0 0
  %249 = vmatpush2.bf16.msra.mxu0 0
  %250 = vmatprep.subr.bf16.mxu0 0
  %251 = vmatpush2.bf16.msra.mxu0 0
  %252 = vmatprep.subr.bf16.mxu0 0
  %253 = vmatpush2.bf16.msra.mxu0 0
  %254 = vmatprep.mubr.bf16.mxu0 0
  %255 = vmatmul.mubr.bf16.gmra.mxu0 %v180
  %v256 = vpop.f32.mrf.mxu0
  %v257 = vadd.f32 %v217, %v256
  %v258 = vpop.f32.mrf.mxu0
  %v259 = vpop.f32.mrf.mxu0
  %v260 = vpop.f32.mrf.mxu0
  %261 = vdwg.mxu0
  %v262 = vsub.f32 0.0, %v257
  %v263 = vmul.f32 %v262, 1.442695
  %v264 = vpow.pop %v263
  %v265 = vadd.f32 %v264, 1.0
  %v266 = vrcp.pop %v265
  %v267 = vmul.f32 %v257, %v266
  %268 = vst [vmem:[%s3] sm:$0xff] %v267
  // Predicated region
  $region14: #{_lambda_.5} parent=0 // pred_check
    _
  $region15: #{_lambda_.5} parent=0 // pred_check_branch
    %270 = sbr.rel (0) target = $region17
  $region16: #{_lambda_.5} parent=0 // pred_region
    _
  $region17: #{_lambda_.5} parent=0 // pred_fallthru
    _
  // Predicated region
  $region18: #{_lambda_.5} parent=0 // pred_check
    _
  $region19: #{_lambda_.5} parent=0 // pred_check_branch
    %272 = sbr.rel (0) target = $region21
  $region20: #{_lambda_.5} parent=0 // pred_region
    _
  $region21: #{_lambda_.5} parent=0 // pred_fallthru
    _

</llo_original>
